<compile_context>
chip_gen: v7x
topology: tpu7x:2x2x1
jax: 0.10.0
libtpu: 0.0.40
codegen_flags: <defaults>
</compile_context>

<pallas_src>
import jax
import jax.numpy as jnp
from jax.experimental import pallas as pl
from jax.experimental.pallas import tpu as pltpu


LANES = 512                    # lane-dense last dim (multiple of 128)
MAX_TILE_ROWS = 4096           # (4096, 512) f32 block = 8 MiB per buffer
SMALL_FALLBACK_ELEMS = 65536   # below this, plain XLA elementwise is faster


def _linear1_kernel(w_ref, b_ref, x_ref, o_ref):
    # w_ref: (1, 1) in SMEM, b_ref: (1,) in SMEM -> scalar reads.
    w = w_ref[0, 0]
    b = b_ref[0]
    o_ref[...] = (x_ref[...].astype(jnp.float32) * w + b).astype(o_ref.dtype)


def _round_up(a, b):
    return ((a + b - 1) // b) * b


def _sublane_multiple(dtype):
    # f32/i32 -> 8, bf16/f16 -> 16, int8/fp8 -> 32 (sublane packing).
    return {4: 8, 2: 16, 1: 32}.get(jnp.dtype(dtype).itemsize, 8)


def _dimension_semantics(num_tiles):
    # CORE_PARALLEL only actually shards the grid across multiple TensorCores
    # (v7x); fall back to plain "parallel" everywhere else.
    if num_tiles < 2:
        return ("arbitrary",)
    try:
        info = pltpu.get_tpu_info()
        for attr in ("num_cores", "cores_per_chip", "num_tensorcores"):
            v = getattr(info, attr, None)
            if isinstance(v, int) and v >= 2:
                return (pltpu.CORE_PARALLEL,)
    except Exception:
        pass
    return ("parallel",)


def dummy_fsdp_forward(x, weight, bias, *, min_pallas_elements=SMALL_FALLBACK_ELEMS):
    """DummyFSDP(Linear(1, 1)).forward.

    x: [..., 1]; weight: [1, 1]; bias: [1] -> same shape/dtype as x.
    """
    orig_shape = x.shape
    orig_dtype = x.dtype
    n = int(x.size)

    w = jnp.asarray(weight, jnp.float32).reshape(1, 1)
    b = jnp.asarray(bias, jnp.float32).reshape(1)

    if n < min_pallas_elements:
        # Tiny input: pallas_call launch + reshape overhead is pure loss.
        return (x.astype(jnp.float32) * w[0, 0] + b[0]).astype(orig_dtype)

    # Lane-dense 2D view [rows, LANES]; only pad the < LANES remainder.
    cols = LANES
    rows = max(1, pl.cdiv(n, cols))
    pad = rows * cols - n

    x_flat = jnp.reshape(x, (-1,))
    if pad:
        x_flat = jnp.pad(x_flat, (0, pad))
    x2d = x_flat.reshape(rows, cols)

    sub = _sublane_multiple(orig_dtype)
    tile_rows = min(MAX_TILE_ROWS, _round_up(rows, sub))
    num_tiles = pl.cdiv(rows, tile_rows)
    grid = (num_tiles,)

    itemsize = jnp.dtype(orig_dtype).itemsize
    y2d = pl.pallas_call(
        _linear1_kernel,
        out_shape=jax.ShapeDtypeStruct((rows, cols), orig_dtype),
        grid=grid,
        in_specs=[
            pl.BlockSpec(memory_space=pltpu.MemorySpace.SMEM),   # weight scalar
            pl.BlockSpec(memory_space=pltpu.MemorySpace.SMEM),   # bias scalar
            pl.BlockSpec((tile_rows, cols), lambda i: (i, 0)),   # x row tile
        ],
        out_specs=pl.BlockSpec((tile_rows, cols), lambda i: (i, 0)),
        compiler_params=pltpu.CompilerParams(
            dimension_semantics=_dimension_semantics(num_tiles),
            vmem_limit_bytes=48 * 1024 * 1024,      # 2 bufs x (in + out) x 8 MiB ~ 32 MiB
            allow_input_fusion=[False, False, True],  # fuse pad/reshape into the x operand
        ),
        cost_estimate=pl.CostEstimate(
            flops=2 * n, transcendentals=0, bytes_accessed=2 * n * itemsize),
    )(w, b, x2d)

    # Drop lane padding (only when it was added) and restore original layout.
    if pad:
        return y2d.reshape(-1)[:n].reshape(orig_shape)
    return y2d.reshape(orig_shape)


# TODO(synk): FSDP parameter sharding / checkpoint wrapping has no runtime effect
# in forward (pure delegation), so only the wrapped Linear(1,1) is implemented.


if __name__ == "__main__":
    key = jax.random.PRNGKey(0)
    kx, kw, kb, kx2 = jax.random.split(key, 4)

    # Deterministic parameters mimicking nn.Linear(1, 1): weight (1,1), bias (1,)
    weight = jax.random.uniform(kw, (1, 1), dtype=jnp.float32, minval=-1.0, maxval=1.0)
    bias = jax.random.uniform(kb, (1,), dtype=jnp.float32, minval=-1.0, maxval=1.0)

    # Small shape consistent with the module's usage: [batch=2, seq=8, features=1].
    B, S = 2, 8
    x = jax.random.normal(kx, (B, S, 1), dtype=jnp.float32)

    # Force the Pallas path even at this tiny size so the kernel itself is exercised.
    y = dummy_fsdp_forward(x, weight, bias, min_pallas_elements=0)
    jax.block_until_ready(y)
    y_ref = x * weight[0, 0] + bias[0]
    assert y.shape == (B, S, 1)
    assert jnp.allclose(y, y_ref, atol=1e-6), "mismatch vs reference (small, pallas)"

    # Default path at this size takes the cheap jnp fallback; must agree too.
    y_fb = dummy_fsdp_forward(x, weight, bias)
    jax.block_until_ready(y_fb)
    assert jnp.allclose(y_fb, y_ref, atol=1e-6), "mismatch vs reference (small, fallback)"

    # Lane-aligned fast path: no pad, no output slice, single full block.
    xa = jax.random.normal(kx2, (8, 512, 1), dtype=jnp.float32)
    ya = dummy_fsdp_forward(xa, weight, bias, min_pallas_elements=0)
    jax.block_until_ready(ya)
    assert jnp.allclose(ya, xa * weight[0, 0] + bias[0], atol=1e-6), \
        "mismatch vs reference (aligned)"

    # Multi-tile grid + ragged row boundary + padded tail through the Pallas path.
    B2, S2 = 3, 800_001   # 2,400,003 elements -> 2 row tiles of (4096, 512)
    x2 = jax.random.normal(kx2, (B2, S2, 1), dtype=jnp.float32)
    y2 = dummy_fsdp_forward(x2, weight, bias)
    jax.block_until_ready(y2)
    y2_ref = x2 * weight[0, 0] + bias[0]
    assert y2.shape == (B2, S2, 1)
    assert jnp.allclose(y2, y2_ref, atol=1e-6), "mismatch vs reference (tiled)"

    print("KERNEL_OK")
</pallas_src>

<mosaic_0001>
module attributes {stable_mosaic.version = 11 : i64} {
  func.func @_linear1_kernel(%arg0: i32, %arg1: memref<1x1xf32, #tpu.memory_space<smem>>, %arg2: memref<1xf32, #tpu.memory_space<smem>>, %arg3: memref<8x512xf32, #tpu.memory_space<vmem>>, %arg4: memref<8x512xf32, #tpu.memory_space<vmem>>) attributes {dimension_semantics = [#tpu.dimension_semantics<arbitrary>], iteration_bounds = array<i64: 1>, scalar_prefetch = 0 : i64, scratch_operands = 0 : i64, tpu.core_type = #tpu.core_type<tc>, window_params = [{transform_indices = @transform_0, window_bounds = array<i64: 1, 1>}, {transform_indices = @transform_1, window_bounds = array<i64: 1>}, {transform_indices = @transform_2, window_bounds = array<i64: 8, 512>}, {transform_indices = @transform_3, window_bounds = array<i64: 8, 512>}]} {
    %c0 = arith.constant 0 : index
    %c0_0 = arith.constant 0 : index
    %0 = memref.load %arg1[%c0, %c0_0] : memref<1x1xf32, #tpu.memory_space<smem>>
    %c0_1 = arith.constant 0 : index
    %1 = memref.load %arg2[%c0_1] : memref<1xf32, #tpu.memory_space<smem>>
    %c0_2 = arith.constant 0 : index
    %c0_3 = arith.constant 0 : index
    %2 = vector.load %arg3[%c0_2, %c0_3] : memref<8x512xf32, #tpu.memory_space<vmem>>, vector<8x512xf32>
    %3 = vector.broadcast %0 : f32 to vector<8x512xf32>
    %4 = arith.mulf %2, %3 : vector<8x512xf32>
    %5 = vector.broadcast %1 : f32 to vector<8x512xf32>
    %6 = arith.addf %4, %5 : vector<8x512xf32>
    %c0_4 = arith.constant 0 : index
    %c0_5 = arith.constant 0 : index
    %7 = vector.load %arg4[%c0_4, %c0_5] : memref<8x512xf32, #tpu.memory_space<vmem>>, vector<8x512xf32>
    tpu.vector_store %arg4[%c0_4, %c0_5], %6 {strides = array<i32>} : memref<8x512xf32, #tpu.memory_space<vmem>>, vector<8x512xf32>,
    return
  }
  func.func @transform_0(%arg0: i32) -> (i32, i32) {
    %c0_i32 = arith.constant 0 : i32
    %c0_i32_0 = arith.constant 0 : i32
    %c0_i32_1 = arith.constant 0 : i32
    return %c0_i32, %c0_i32_0 : i32, i32
  }
  func.func @transform_1(%arg0: i32) -> i32 {
    %c0_i32 = arith.constant 0 : i32
    %c0_i32_0 = arith.constant 0 : i32
    return %c0_i32 : i32
  }
  func.func @transform_2(%arg0: i32) -> (i32, i32) {
    %c0_i32 = arith.constant 0 : i32
    %c0_i32_0 = arith.constant 0 : i32
    return %arg0, %c0_i32 : i32, i32
  }
  func.func @transform_3(%arg0: i32) -> (i32, i32) {
    %c0_i32 = arith.constant 0 : i32
    %c0_i32_0 = arith.constant 0 : i32
    return %arg0, %c0_i32 : i32, i32
  }
}

</mosaic_0001>

<llo_original>
// kernel: tpu_custom_call.1
$region0: #{tpu_custom_call.1}
  #allocation0 [shape = 'u32[]', space=smem, size = 0x4, offset = 0x4, fixed_abs, tag = 'smem constant byte address 0x4 - core index']
  #allocation1 [shape = 'u32[144,128]{1,0:T(1,128)}', space=vmem, size = 0x12000, scoped, tag = 'internal scratch']
  #allocation2 [shape = 'f32[1,1]{1,0:T(1,128)S(6)}', space=smem, size = 0x200, scoped, tag = 'scoped memory for tpu_custom_call.1']
  #allocation3 [shape = 'f32[1]{0:T(128)S(6)}', space=smem, size = 0x200, scoped, tag = 'scoped memory for tpu_custom_call.1']
  %s0 = inlined_call_operand.<no memory space> [shape: f32[1,1], index: 0, kind: input, shape index: {}]
  %s1 = inlined_call_operand.<no memory space> [shape: f32[1], index: 1, kind: input, shape index: {}]
  %s2 = inlined_call_operand.vmem [shape: f32[1,512], index: 2, kind: input, shape index: {}]
  %s3 = inlined_call_operand.hbm [shape: f32[1,512], index: 3, kind: output, shape index: {}]
  %s4 = sld [smem:[#allocation0]]
  $region22: #{tpu_custom_call.1} parent=0
    _
  %s6 = ssub.s32 1, %s4
  %s7 = scalar_select 0, %s6, %s4
  %8 = sst [smem:[#allocation2]] %s0
  %9 = sst [smem:[#allocation3]] %s1
  $region1: #{tpu_custom_call.1} parent=0
    #allocation4 [shape = 'u8[16384]{0}', space=vmem, size = 0x4000, scoped, tag = 'output window, operand 0, single buffered']
    #allocation5 [shape = 's32[1]{0}', space=sflag, size = 0x4, scoped, tag = 'scoped memory for tpu_custom_call.1']
    %10 = vsyncpa [#allocation5], 0
    // Predicated region
    $region2: #{tpu_custom_call.1} parent=1 // pred_check
      _
    $region3: #{tpu_custom_call.1} parent=1 // pred_check_branch
      %12 = sbr.rel (0) target = $region5
    $region4: #{tpu_custom_call.1} parent=1 // pred_region
      _
    $region5: #{tpu_custom_call.1} parent=1 // pred_fallthru
      _
    // Predicated region
    $region6: #{tpu_custom_call.1} parent=1 // pred_check
      _
    $region7: #{tpu_custom_call.1} parent=1 // pred_check_branch
      %14 = sbr.rel (0) target = $region9
    $region8: #{tpu_custom_call.1} parent=1 // pred_region
      _
    $region9: #{tpu_custom_call.1} parent=1 // pred_fallthru
      _
    // Predicated region
    $region10: #{tpu_custom_call.1} parent=1 // pred_check
      _
    $region11: #{tpu_custom_call.1} parent=1 // pred_check_branch
      %16 = sbr.rel (0) target = $region13
    $region12: #{tpu_custom_call.1} parent=1 // pred_region
      _
    $region13: #{tpu_custom_call.1} parent=1 // pred_fallthru
      _
    %s17 = sld [smem:[#allocation2]]
    %s18 = sld [smem:[#allocation3]]
    %v19 = vld [vmem:[%s2] sm:$0xf]
    %v20 = vld [vmem:[%s2 + $0x4] sm:$0xf]
    %v21 = vld [vmem:[%s2 + $0x8] sm:$0xf]
    %v22 = vld [vmem:[%s2 + $0xc] sm:$0xf]
    %v23 = vld [vmem:[%s2 + $0x10] sm:$0xf]
    %v24 = vld [vmem:[%s2 + $0x14] sm:$0xf]
    %v25 = vld [vmem:[%s2 + $0x18] sm:$0xf]
    %v26 = vld [vmem:[%s2 + $0x1c] sm:$0xf]
    %v27 = vstv %s17
    %v28 = vmul.f32 %v19, %v27
    %v29 = vmul.f32 %v20, %v27
    %v30 = vmul.f32 %v21, %v27
    %v31 = vmul.f32 %v22, %v27
    %v32 = vmul.f32 %v23, %v27
    %v33 = vmul.f32 %v24, %v27
    %v34 = vmul.f32 %v25, %v27
    %v35 = vmul.f32 %v26, %v27
    %v36 = vstv %s18
    %v37 = vadd.f32 %v28, %v36
    %v38 = vadd.f32 %v29, %v36
    %v39 = vadd.f32 %v30, %v36
    %v40 = vadd.f32 %v31, %v36
    %v41 = vadd.f32 %v32, %v36
    %v42 = vadd.f32 %v33, %v36
    %v43 = vadd.f32 %v34, %v36
    %v44 = vadd.f32 %v35, %v36
    %v45 = vlaneseq
    %vm46 = vcmp.ge.s32.totalorder %v45, 0
    %vm47 = vcmp.lt.s32.totalorder %v45, 512
    %vm48 = vmand %vm46, %vm47
    %49 = vst.msk [vmem:[#allocation4] sm:$0xf] %vm48, %v37
    %50 = vst.msk [vmem:[#allocation4 + $0x4] sm:$0xf] %vm48, %v38
    %51 = vst.msk [vmem:[#allocation4 + $0x8] sm:$0xf] %vm48, %v39
    %52 = vst.msk [vmem:[#allocation4 + $0xc] sm:$0xf] %vm48, %v40
    %53 = vst.msk [vmem:[#allocation4 + $0x10] sm:$0xf] %vm48, %v41
    %54 = vst.msk [vmem:[#allocation4 + $0x14] sm:$0xf] %vm48, %v42
    %55 = vst.msk [vmem:[#allocation4 + $0x18] sm:$0xf] %vm48, %v43
    %56 = vst.msk [vmem:[#allocation4 + $0x1c] sm:$0xf] %vm48, %v44
    // Predicated region
    $region14: #{tpu_custom_call.1} parent=1 // pred_check
      _
    $region15: #{tpu_custom_call.1} parent=1 // pred_check_branch
      %58 = sbr.rel (0) target = $region17
    $region16: #{tpu_custom_call.1} parent=1 // pred_region
      %s60 = ssub.s32 512, 64
      %61 = vsyncadd [#allocation5], %s60
      %s62 = sshll.u32 [#allocation4], 4
      %s63 = int_to_ptr.vmem [resolvable:$true] %s62
      %68 = dma.vmem_to_hbm [thread:$0]  %s63, 64, %s3, [#allocation5], 64, 64, 4
    $region17: #{tpu_custom_call.1} parent=1 // pred_fallthru
      _
    // Predicated region
    $region18: #{tpu_custom_call.1} parent=1 // pred_check
      _
    $region19: #{tpu_custom_call.1} parent=1 // pred_check_branch
      %70 = sbr.rel (0) target = $region21
    $region20: #{tpu_custom_call.1} parent=1 // pred_region
      %71 = dma.done [#allocation5], 512
    $region21: #{tpu_custom_call.1} parent=1 // pred_fallthru
      _
    %72 = vsyncpa [#allocation5], 1

</llo_original>
